<compile_context>
chip_gen: v7x
topology: tpu7x:2x2x1
jax: 0.10.0
libtpu: 0.0.40
codegen_flags: <defaults>
</compile_context>

<pallas_src>
import functools

import jax
import jax.numpy as jnp
from jax.experimental import pallas as pl
from jax.experimental.pallas import tpu as pltpu

IN_FEATURES = 20
HIDDEN = 256
OUT_FEATURES = 10
OUT_PAD = 128           # lane-dense output width (pad 10 -> 128, sliced off in wrapper)
DEFAULT_TILE_B = 128    # batch tile (multiple of 8 sublanes)


def _round_up(n, m):
    return ((n + m - 1) // m) * m


def _mlp_kernel(x_ref, w1_ref, b1_ref, w2_ref, b2_ref, o_ref):
    # Fused Linear(20->256) -> ReLU -> Linear(256->OUT_PAD) on one batch tile.
    x = x_ref[...]                                                    # (TB, 20) bf16
    h = jnp.dot(x, w1_ref[...], preferred_element_type=jnp.float32)   # (TB, 256) f32 (MXU)
    h = jnp.maximum(h + b1_ref[...], 0.0)                             # f32 bias + ReLU (VPU)
    y = jnp.dot(h.astype(w2_ref.dtype), w2_ref[...],
                preferred_element_type=jnp.float32) + b2_ref[...]     # (TB, 128) f32 (MXU)
    o_ref[...] = y.astype(o_ref.dtype)                                # unmasked 128-lane store


@functools.partial(jax.jit, static_argnames=("tile_b",))
def my_sequential_forward(x, w1, b1, w2, b2, *, tile_b=DEFAULT_TILE_B):
    """Pallas forward for MLP: relu(x @ w1 + b1) @ w2 + b2."""
    batch = x.shape[0]
    out_dtype = x.dtype

    # Batch tile: multiple of 8 sublanes, capped at `tile_b`; grid over padded batch.
    tb = min(tile_b, max(8, _round_up(batch, 8)))
    padded_b = _round_up(batch, tb)

    # Pad batch with zero rows (sliced off afterwards) and pad layer-2 output
    # width to a full 128-lane slab so the writeback is lane-dense.
    x_p = jnp.pad(x, ((0, padded_b - batch), (0, 0))).astype(jnp.bfloat16)
    w1_b = w1.astype(jnp.bfloat16)
    w2_p = jnp.pad(w2, ((0, 0), (0, OUT_PAD - OUT_FEATURES))).astype(jnp.bfloat16)
    b1_f = b1.astype(jnp.float32)
    b2_p = jnp.pad(b2, ((0, 0), (0, OUT_PAD - OUT_FEATURES))).astype(jnp.float32)

    grid = (padded_b // tb,)

    def const(shape):
        # Weights / biases: same (only) block at every grid step -> VMEM-resident.
        return pl.BlockSpec(shape, lambda i: (0, 0))

    y_p = pl.pallas_call(
        _mlp_kernel,
        out_shape=jax.ShapeDtypeStruct((padded_b, OUT_PAD), jnp.float32),
        grid=grid,
        in_specs=[
            pl.BlockSpec((tb, IN_FEATURES), lambda i: (i, 0)),  # x: tiled over batch
            const((IN_FEATURES, HIDDEN)),
            const((1, HIDDEN)),
            const((HIDDEN, OUT_PAD)),
            const((1, OUT_PAD)),
        ],
        out_specs=pl.BlockSpec((tb, OUT_PAD), lambda i: (i, 0)),
        compiler_params=pltpu.CompilerParams(
            dimension_semantics=("parallel",),
        ),
    )(x_p, w1_b, b1_f, w2_p, b2_p)

    return y_p[:batch, :OUT_FEATURES].astype(out_dtype)


def init_params(key):
    """PyTorch nn.Linear-style init: uniform(-1/sqrt(fan_in), 1/sqrt(fan_in))."""
    k1, k2, k3, k4 = jax.random.split(key, 4)
    bound1 = 1.0 / jnp.sqrt(IN_FEATURES)
    bound2 = 1.0 / jnp.sqrt(HIDDEN)
    w1 = jax.random.uniform(k1, (IN_FEATURES, HIDDEN), jnp.float32, -bound1, bound1)
    b1 = jax.random.uniform(k2, (1, HIDDEN), jnp.float32, -bound1, bound1)
    w2 = jax.random.uniform(k3, (HIDDEN, OUT_FEATURES), jnp.float32, -bound2, bound2)
    b2 = jax.random.uniform(k4, (1, OUT_FEATURES), jnp.float32, -bound2, bound2)
    return w1, b1, w2, b2


if __name__ == "__main__":
    key = jax.random.PRNGKey(0)
    kx, kp = jax.random.split(key)
    w1, b1, w2, b2 = init_params(kp)

    def ref_fwd(x):  # plain-JAX reference, same math as the PyTorch forward
        return jnp.maximum(x @ w1 + b1, 0.0) @ w2 + b2

    # Small shape consistent with the spec (X = torch.rand([1, 20])); batch=2.
    x_small = jax.random.uniform(kx, (2, IN_FEATURES), jnp.float32)
    out_small = jax.block_until_ready(my_sequential_forward(x_small, w1, b1, w2, b2))
    assert out_small.shape == (2, OUT_FEATURES)
    # bf16 weights/activations on the MXU -> loosen tolerance vs the f32 reference.
    assert jnp.allclose(out_small, ref_fwd(x_small), atol=5e-2, rtol=5e-2)

    # Second case (batch not a multiple of the tile) exercises padding + grid.
    x2 = jax.random.uniform(jax.random.PRNGKey(1), (100, IN_FEATURES), jnp.float32)
    out2 = jax.block_until_ready(my_sequential_forward(x2, w1, b1, w2, b2))
    assert out2.shape == (100, OUT_FEATURES)
    assert jnp.allclose(out2, ref_fwd(x2), atol=5e-2, rtol=5e-2)

    print("KERNEL_OK")
</pallas_src>

<mosaic_0001>
module attributes {stable_mosaic.version = 11 : i64} {
  func.func @_mlp_kernel(%arg0: i32, %arg1: memref<8x20xbf16, #tpu.memory_space<vmem>>, %arg2: memref<20x256xbf16, #tpu.memory_space<vmem>>, %arg3: memref<1x256xf32, #tpu.memory_space<vmem>>, %arg4: memref<256x128xbf16, #tpu.memory_space<vmem>>, %arg5: memref<1x128xf32, #tpu.memory_space<vmem>>, %arg6: memref<8x128xf32, #tpu.memory_space<vmem>>) attributes {dimension_semantics = [#tpu.dimension_semantics<parallel>], iteration_bounds = array<i64: 1>, scalar_prefetch = 0 : i64, scratch_operands = 0 : i64, tpu.core_type = #tpu.core_type<tc>, window_params = [{transform_indices = @transform_0, window_bounds = array<i64: 8, 20>}, {pipeline_mode = #tpu.pipeline_mode<synchronous>, transform_indices = @transform_1, window_bounds = array<i64: 20, 256>}, {pipeline_mode = #tpu.pipeline_mode<synchronous>, transform_indices = @transform_2, window_bounds = array<i64: 1, 256>}, {pipeline_mode = #tpu.pipeline_mode<synchronous>, transform_indices = @transform_3, window_bounds = array<i64: 256, 128>}, {pipeline_mode = #tpu.pipeline_mode<synchronous>, transform_indices = @transform_4, window_bounds = array<i64: 1, 128>}, {transform_indices = @transform_5, window_bounds = array<i64: 8, 128>}]} {
    %c0 = arith.constant 0 : index
    %c0_0 = arith.constant 0 : index
    %0 = vector.load %arg1[%c0, %c0_0] : memref<8x20xbf16, #tpu.memory_space<vmem>>, vector<8x20xbf16>
    %c0_1 = arith.constant 0 : index
    %c0_2 = arith.constant 0 : index
    %1 = vector.load %arg2[%c0_1, %c0_2] : memref<20x256xbf16, #tpu.memory_space<vmem>>, vector<20x256xbf16>
    %cst = arith.constant dense<0.000000e+00> : vector<8x256xf32>
    %2 = tpu.matmul %0, %1, %cst {dimension_numbers = #tpu.dot_dimension_numbers<[1], [0], [0], [1], [0, 0, 1, 1], [], []>} : vector<8x20xbf16>, vector<20x256xbf16>, vector<8x256xf32> -> vector<8x256xf32>
    %c0_3 = arith.constant 0 : index
    %c0_4 = arith.constant 0 : index
    %3 = vector.load %arg3[%c0_3, %c0_4] : memref<1x256xf32, #tpu.memory_space<vmem>>, vector<1x256xf32>
    %4 = vector.broadcast %3 : vector<1x256xf32> to vector<8x256xf32>
    %5 = arith.addf %2, %4 : vector<8x256xf32>
    %cst_5 = arith.constant 0.000000e+00 : f32
    %6 = vector.broadcast %cst_5 : f32 to vector<8x256xf32>
    %7 = arith.maximumf %5, %6 : vector<8x256xf32>
    %8 = arith.truncf %7 : vector<8x256xf32> to vector<8x256xbf16>
    %c0_6 = arith.constant 0 : index
    %c0_7 = arith.constant 0 : index
    %9 = vector.load %arg4[%c0_6, %c0_7] : memref<256x128xbf16, #tpu.memory_space<vmem>>, vector<256x128xbf16>
    %cst_8 = arith.constant dense<0.000000e+00> : vector<8x128xf32>
    %10 = tpu.matmul %8, %9, %cst_8 {dimension_numbers = #tpu.dot_dimension_numbers<[1], [0], [0], [1], [0, 0, 1, 1], [], []>} : vector<8x256xbf16>, vector<256x128xbf16>, vector<8x128xf32> -> vector<8x128xf32>
    %c0_9 = arith.constant 0 : index
    %c0_10 = arith.constant 0 : index
    %11 = vector.load %arg5[%c0_9, %c0_10] : memref<1x128xf32, #tpu.memory_space<vmem>>, vector<1x128xf32>
    %12 = vector.broadcast %11 : vector<1x128xf32> to vector<8x128xf32>
    %13 = arith.addf %10, %12 : vector<8x128xf32>
    %c0_11 = arith.constant 0 : index
    %c0_12 = arith.constant 0 : index
    %14 = vector.load %arg6[%c0_11, %c0_12] : memref<8x128xf32, #tpu.memory_space<vmem>>, vector<8x128xf32>
    tpu.vector_store %arg6[%c0_11, %c0_12], %13 {strides = array<i32>} : memref<8x128xf32, #tpu.memory_space<vmem>>, vector<8x128xf32>,
    return
  }
  func.func @transform_0(%arg0: i32) -> (i32, i32) {
    %c0_i32 = arith.constant 0 : i32
    %c0_i32_0 = arith.constant 0 : i32
    return %arg0, %c0_i32 : i32, i32
  }
  func.func @transform_1(%arg0: i32) -> (i32, i32) {
    %c0_i32 = arith.constant 0 : i32
    %c0_i32_0 = arith.constant 0 : i32
    %c0_i32_1 = arith.constant 0 : i32
    return %c0_i32, %c0_i32_0 : i32, i32
  }
  func.func @transform_2(%arg0: i32) -> (i32, i32) {
    %c0_i32 = arith.constant 0 : i32
    %c0_i32_0 = arith.constant 0 : i32
    %c0_i32_1 = arith.constant 0 : i32
    return %c0_i32, %c0_i32_0 : i32, i32
  }
  func.func @transform_3(%arg0: i32) -> (i32, i32) {
    %c0_i32 = arith.constant 0 : i32
    %c0_i32_0 = arith.constant 0 : i32
    %c0_i32_1 = arith.constant 0 : i32
    return %c0_i32, %c0_i32_0 : i32, i32
  }
  func.func @transform_4(%arg0: i32) -> (i32, i32) {
    %c0_i32 = arith.constant 0 : i32
    %c0_i32_0 = arith.constant 0 : i32
    %c0_i32_1 = arith.constant 0 : i32
    return %c0_i32, %c0_i32_0 : i32, i32
  }
  func.func @transform_5(%arg0: i32) -> (i32, i32) {
    %c0_i32 = arith.constant 0 : i32
    %c0_i32_0 = arith.constant 0 : i32
    return %arg0, %c0_i32 : i32, i32
  }
}

</mosaic_0001>

<llo_original>
// kernel: my_sequential_forward.1
$region0: #{my_sequential_forward.1}
  #allocation0 [shape = 'u32[]', space=smem, size = 0x4, offset = 0x4, fixed_abs, tag = 'smem constant byte address 0x4 - core index']
  #allocation1 [shape = 'u32[144,128]{1,0:T(1,128)}', space=vmem, size = 0x12000, scoped, tag = 'internal scratch']
  %s0 = inlined_call_operand.vmem [shape: bf16[8,20], index: 0, kind: input, shape index: {}]
  %s1 = inlined_call_operand.vmem [shape: bf16[20,256], index: 1, kind: input, shape index: {}]
  %s2 = inlined_call_operand.vmem [shape: f32[1,256], index: 2, kind: input, shape index: {}]
  %s3 = inlined_call_operand.vmem [shape: bf16[256,128], index: 3, kind: input, shape index: {}]
  %s4 = inlined_call_operand.vmem [shape: f32[1,128], index: 4, kind: input, shape index: {}]
  %s5 = inlined_call_operand.vmem [shape: f32[8,128], index: 5, kind: output, shape index: {}]
  %s6 = sld [smem:[#allocation0]]
  $region30: #{my_sequential_forward.1} parent=0
    _
  %s8 = ssub.s32 1, %s6
  %s9 = scalar_select 0, %s8, %s6
  // Predicated region
  $region2: #{my_sequential_forward.1} parent=0 // pred_check
    _
  $region3: #{my_sequential_forward.1} parent=0 // pred_check_branch
    %11 = sbr.rel (0) target = $region5
  $region4: #{my_sequential_forward.1} parent=0 // pred_region
    _
  $region5: #{my_sequential_forward.1} parent=0 // pred_fallthru
    _
  // Predicated region
  $region6: #{my_sequential_forward.1} parent=0 // pred_check
    _
  $region7: #{my_sequential_forward.1} parent=0 // pred_check_branch
    %13 = sbr.rel (0) target = $region9
  $region8: #{my_sequential_forward.1} parent=0 // pred_region
    _
  $region9: #{my_sequential_forward.1} parent=0 // pred_fallthru
    _
  // Predicated region
  $region10: #{my_sequential_forward.1} parent=0 // pred_check
    _
  $region11: #{my_sequential_forward.1} parent=0 // pred_check_branch
    %15 = sbr.rel (0) target = $region13
  $region12: #{my_sequential_forward.1} parent=0 // pred_region
    _
  $region13: #{my_sequential_forward.1} parent=0 // pred_fallthru
    _
  // Predicated region
  $region14: #{my_sequential_forward.1} parent=0 // pred_check
    _
  $region15: #{my_sequential_forward.1} parent=0 // pred_check_branch
    %17 = sbr.rel (0) target = $region17
  $region16: #{my_sequential_forward.1} parent=0 // pred_region
    _
  $region17: #{my_sequential_forward.1} parent=0 // pred_fallthru
    _
  // Predicated region
  $region18: #{my_sequential_forward.1} parent=0 // pred_check
    _
  $region19: #{my_sequential_forward.1} parent=0 // pred_check_branch
    %19 = sbr.rel (0) target = $region21
  $region20: #{my_sequential_forward.1} parent=0 // pred_region
    _
  $region21: #{my_sequential_forward.1} parent=0 // pred_fallthru
    _
  %v21 = vld [vmem:[%s0] sm:$0xf]
  %v22 = vld [vmem:[%s1] sm:$0xff]
  %v23 = vld [vmem:[%s1 + $0x8] sm:$0xff]
  %v24 = vld [vmem:[%s1 + $0x10] sm:$0x33]
  %v25 = vld [vmem:[%s2] sm:$0x3]
  %v27 = vlaneseq
  %v28 = vshrl.u32 %v27, 7
  %v29 = vsub.s32 0, %v28
  %v30 = vrot.slane %v25, %v29
  %v31 = vlaneseq
  %v32 = vshrl.u32 %v31, 7
  %v33 = vsub.s32 1, %v32
  %v34 = vrot.slane %v25, %v33
  %v40 = vunpack.c.l.b16 %v22
  %v41 = vunpack.c.h.b16 %v22
  %v42 = vunpack.c.l.b16 %v23
  %v43 = vunpack.c.h.b16 %v23
  %v44 = vunpack.c.l.b16 %v24
  %v45 = vunpack.c.h.b16 %v24
  %v46 = vpack.c.b16 %v42, %v40
  %v47 = vpack.c.b16 %v43, %v41
  %v48 = vpack.c.b16 %v44, %v44
  %v49 = vpack.c.b16 %v45, %v45
  %vm52 = vcmask 162816
  %v54 = vsel %vm52, %v21, 0
  %vm56 = vcmask 1041408
  %v58 = vsel %vm56, %v48, 0
  %v61 = vsel %vm56, %v49, 0
  %63 = vmatprep.subr.bf16.mxu0 %v47
  %64 = vmatpush1.bf16.msra.mxu0 %v46
  %65 = vmatprep.subr.bf16.mxu0 %v61
  %66 = vmatpush1.bf16.msra.mxu0 %v58
  %67 = vmatprep.subr.bf16.mxu0 0
  %68 = vmatpush1.bf16.msra.mxu0 0
  %69 = vmatprep.subr.bf16.mxu0 0
  %70 = vmatpush1.bf16.msra.mxu0 0
  %71 = vmatprep.subr.bf16.mxu0 0
  %72 = vmatpush1.bf16.msra.mxu0 0
  %73 = vmatprep.subr.bf16.mxu0 0
  %74 = vmatpush1.bf16.msra.mxu0 0
  %75 = vmatprep.subr.bf16.mxu0 0
  %76 = vmatpush1.bf16.msra.mxu0 0
  %77 = vmatprep.subr.bf16.mxu0 0
  %78 = vmatpush1.bf16.msra.mxu0 0
  %79 = vmatprep.subr.bf16.mxu0 0
  %80 = vmatpush1.bf16.msra.mxu0 0
  %81 = vmatprep.subr.bf16.mxu0 0
  %82 = vmatpush1.bf16.msra.mxu0 0
  %83 = vmatprep.subr.bf16.mxu0 0
  %84 = vmatpush1.bf16.msra.mxu0 0
  %85 = vmatprep.subr.bf16.mxu0 0
  %86 = vmatpush1.bf16.msra.mxu0 0
  %87 = vmatprep.subr.bf16.mxu0 0
  %88 = vmatpush1.bf16.msra.mxu0 0
  %89 = vmatprep.subr.bf16.mxu0 0
  %90 = vmatpush1.bf16.msra.mxu0 0
  %91 = vmatprep.subr.bf16.mxu0 0
  %92 = vmatpush1.bf16.msra.mxu0 0
  %93 = vmatprep.subr.bf16.mxu0 0
  %94 = vmatpush1.bf16.msra.mxu0 0
  %95 = vmatprep.mubr.bf16.mxu0 0
  %96 = vmatmul.mubr.bf16.gmra.mrb[0].mxu0 %v54
  %v97 = vpop.f32.mrb[0].mxu0
  %v98 = vadd.f32 %v30, %v97
  %v99 = vpop.f32.mrb[0].mxu0
  %v100 = vadd.f32 %v34, %v99
  %v101 = vpop.f32.mrb[0].mxu0
  %v102 = vpop.f32.mrb[0].mxu0
  %103 = vdwg.mxu0
  %v104 = vmax.f32 %v98, 0.0
  %v105 = vmax.f32 %v100, 0.0
  %v106 = vpack.c.bf16 %v104, %v104
  %v107 = vpack.c.bf16 %v105, %v105
  %v108 = vld [vmem:[%s3] sm:$0xf]
  %v109 = vld [vmem:[%s3 + $0x4] sm:$0xf]
  %v110 = vld [vmem:[%s3 + $0x8] sm:$0xf]
  %v111 = vld [vmem:[%s3 + $0xc] sm:$0xf]
  %v112 = vld [vmem:[%s3 + $0x10] sm:$0xf]
  %v113 = vld [vmem:[%s3 + $0x14] sm:$0xf]
  %v114 = vld [vmem:[%s3 + $0x18] sm:$0xf]
  %v115 = vld [vmem:[%s3 + $0x1c] sm:$0xf]
  %v116 = vld [vmem:[%s3 + $0x20] sm:$0xf]
  %v117 = vld [vmem:[%s3 + $0x24] sm:$0xf]
  %v118 = vld [vmem:[%s3 + $0x28] sm:$0xf]
  %v119 = vld [vmem:[%s3 + $0x2c] sm:$0xf]
  %v120 = vld [vmem:[%s3 + $0x30] sm:$0xf]
  %v121 = vld [vmem:[%s3 + $0x34] sm:$0xf]
  %v122 = vld [vmem:[%s3 + $0x38] sm:$0xf]
  %v123 = vld [vmem:[%s3 + $0x3c] sm:$0xf]
  %v124 = vld [vmem:[%s3 + $0x40] sm:$0xf]
  %v125 = vld [vmem:[%s3 + $0x44] sm:$0xf]
  %v126 = vld [vmem:[%s3 + $0x48] sm:$0xf]
  %v127 = vld [vmem:[%s3 + $0x4c] sm:$0xf]
  %v128 = vld [vmem:[%s3 + $0x50] sm:$0xf]
  %v129 = vld [vmem:[%s3 + $0x54] sm:$0xf]
  %v130 = vld [vmem:[%s3 + $0x58] sm:$0xf]
  %v131 = vld [vmem:[%s3 + $0x5c] sm:$0xf]
  %v132 = vld [vmem:[%s3 + $0x60] sm:$0xf]
  %v133 = vld [vmem:[%s3 + $0x64] sm:$0xf]
  %v134 = vld [vmem:[%s3 + $0x68] sm:$0xf]
  %v135 = vld [vmem:[%s3 + $0x6c] sm:$0xf]
  %v136 = vld [vmem:[%s3 + $0x70] sm:$0xf]
  %v137 = vld [vmem:[%s3 + $0x74] sm:$0xf]
  %v138 = vld [vmem:[%s3 + $0x78] sm:$0xf]
  %v139 = vld [vmem:[%s3 + $0x7c] sm:$0xf]
  %v140 = vld [vmem:[%s4] sm:$0x1]
  %v142 = vlaneseq
  %v143 = vshrl.u32 %v142, 7
  %v144 = vsub.s32 0, %v143
  %v145 = vrot.slane %v140, %v144
  %v179 = vunpack.c.l.b16 %v108
  %v180 = vunpack.c.l.b16 %v109
  %v181 = vunpack.c.l.b16 %v110
  %v182 = vunpack.c.l.b16 %v111
  %v183 = vunpack.c.l.b16 %v112
  %v184 = vunpack.c.l.b16 %v113
  %v185 = vunpack.c.l.b16 %v114
  %v186 = vunpack.c.l.b16 %v115
  %v187 = vunpack.c.l.b16 %v116
  %v188 = vunpack.c.l.b16 %v117
  %v189 = vunpack.c.l.b16 %v118
  %v190 = vunpack.c.l.b16 %v119
  %v191 = vunpack.c.l.b16 %v120
  %v192 = vunpack.c.l.b16 %v121
  %v193 = vunpack.c.l.b16 %v122
  %v194 = vunpack.c.l.b16 %v123
  %v195 = vunpack.c.l.b16 %v124
  %v196 = vunpack.c.l.b16 %v125
  %v197 = vunpack.c.l.b16 %v126
  %v198 = vunpack.c.l.b16 %v127
  %v199 = vunpack.c.l.b16 %v128
  %v200 = vunpack.c.l.b16 %v129
  %v201 = vunpack.c.l.b16 %v130
  %v202 = vunpack.c.l.b16 %v131
  %v203 = vunpack.c.l.b16 %v132
  %v204 = vunpack.c.l.b16 %v133
  %v205 = vunpack.c.l.b16 %v134
  %v206 = vunpack.c.l.b16 %v135
  %v207 = vunpack.c.l.b16 %v136
  %v208 = vunpack.c.l.b16 %v137
  %v209 = vunpack.c.l.b16 %v138
  %v210 = vunpack.c.l.b16 %v139
  %v211 = vpack.c.b16 %v180, %v179
  %v212 = vpack.c.b16 %v182, %v181
  %v213 = vpack.c.b16 %v184, %v183
  %v214 = vpack.c.b16 %v186, %v185
  %v215 = vpack.c.b16 %v188, %v187
  %v216 = vpack.c.b16 %v190, %v189
  %v217 = vpack.c.b16 %v192, %v191
  %v218 = vpack.c.b16 %v194, %v193
  %v219 = vpack.c.b16 %v196, %v195
  %v220 = vpack.c.b16 %v198, %v197
  %v221 = vpack.c.b16 %v200, %v199
  %v222 = vpack.c.b16 %v202, %v201
  %v223 = vpack.c.b16 %v204, %v203
  %v224 = vpack.c.b16 %v206, %v205
  %v225 = vpack.c.b16 %v208, %v207
  %v226 = vpack.c.b16 %v210, %v209
  %243 = vmatprep.subr.bf16.mxu0 0
  %244 = vmatpush1.bf16.msra.mxu0 %v211
  %245 = vmatprep.subr.bf16.mxu0 0
  %246 = vmatpush1.bf16.msra.mxu0 %v212
  %247 = vmatprep.subr.bf16.mxu0 0
  %248 = vmatpush1.bf16.msra.mxu0 %v213
  %249 = vmatprep.subr.bf16.mxu0 0
  %250 = vmatpush1.bf16.msra.mxu0 %v214
  %251 = vmatprep.subr.bf16.mxu0 0
  %252 = vmatpush1.bf16.msra.mxu0 %v215
  %253 = vmatprep.subr.bf16.mxu0 0
  %254 = vmatpush1.bf16.msra.mxu0 %v216
  %255 = vmatprep.subr.bf16.mxu0 0
  %256 = vmatpush1.bf16.msra.mxu0 %v217
  %257 = vmatprep.subr.bf16.mxu0 0
  %258 = vmatpush1.bf16.msra.mxu0 %v218
  %259 = vmatprep.subr.bf16.mxu0 0
  %260 = vmatpush1.bf16.msra.mxu0 %v219
  %261 = vmatprep.subr.bf16.mxu0 0
  %262 = vmatpush1.bf16.msra.mxu0 %v220
  %263 = vmatprep.subr.bf16.mxu0 0
  %264 = vmatpush1.bf16.msra.mxu0 %v221
  %265 = vmatprep.subr.bf16.mxu0 0
  %266 = vmatpush1.bf16.msra.mxu0 %v222
  %267 = vmatprep.subr.bf16.mxu0 0
  %268 = vmatpush1.bf16.msra.mxu0 %v223
  %269 = vmatprep.subr.bf16.mxu0 0
  %270 = vmatpush1.bf16.msra.mxu0 %v224
  %271 = vmatprep.subr.bf16.mxu0 0
  %272 = vmatpush1.bf16.msra.mxu0 %v225
  %273 = vmatprep.subr.bf16.mxu0 0
  %274 = vmatpush1.bf16.msra.mxu0 %v226
  %275 = vmatprep.mubr.bf16.mxu0 %v107
  %276 = vmatmul.mubr.bf16.gmra.mrb[0].mxu0 %v106
  %v277 = vpop.f32.mrb[0].mxu0
  %v278 = vadd.f32 %v145, %v277
  %v279 = vpop.f32.mrb[0].mxu0
  %v280 = vpop.f32.mrb[0].mxu0
  %v281 = vpop.f32.mrb[0].mxu0
  %282 = vdwg.mxu0
  %283 = vst [vmem:[%s5] sm:$0xff] %v278
  // Predicated region
  $region22: #{my_sequential_forward.1} parent=0 // pred_check
    _
  $region23: #{my_sequential_forward.1} parent=0 // pred_check_branch
    %285 = sbr.rel (0) target = $region25
  $region24: #{my_sequential_forward.1} parent=0 // pred_region
    _
  $region25: #{my_sequential_forward.1} parent=0 // pred_fallthru
    _
  // Predicated region
  $region26: #{my_sequential_forward.1} parent=0 // pred_check
    _
  $region27: #{my_sequential_forward.1} parent=0 // pred_check_branch
    %287 = sbr.rel (0) target = $region29
  $region28: #{my_sequential_forward.1} parent=0 // pred_region
    _
  $region29: #{my_sequential_forward.1} parent=0 // pred_fallthru
    _

</llo_original>
